<compile_context>
chip_gen: v5e
topology: v5e:2x2
jax: 0.10.0
libtpu: 0.0.40
codegen_flags: <defaults>
</compile_context>

<pallas_src>
import functools

import jax
import jax.numpy as jnp
from jax.experimental import pallas as pl
from jax.experimental.pallas import tpu as pltpu

EMB_DIM = 300            # word-embedding dim used in the self-test (word2vec-style)
EPS = 1e-8               # torch.nn.CosineSimilarity default eps
MAX_TM = 512             # head rows per tile   (sublane axis)
MAX_TN = 1024            # label cols per tile  (lane axis, multiple of 128)


def _round_up(x, m):
    return ((x + m - 1) // m) * m


def _concept_kernel(h_ref, lt_ref, out_ref):
    # h_ref  : [TM, E_pad]  unit-normalized mean head embeddings (zero-padded)
    # lt_ref : [E_pad, TN]  unit-normalized label embeddings, transposed
    # out_ref: [TM, TN]     cosine-similarity scores
    out_ref[...] = jnp.dot(
        h_ref[...], lt_ref[...], preferred_element_type=jnp.float32
    ).astype(out_ref.dtype)


def concept_branch_forward(heads, labels, word_embedding,
                           matmul_dtype=jnp.bfloat16,
                           out_dtype=jnp.float32):
    """heads: [B,Q,H] int32 token ids (0 = pad), labels: [BL,P] int32 ids,
    word_embedding: [V,E] float32.  Returns scores [B,Q,BL,P] in out_dtype."""
    B, Q, H = heads.shape
    BL, P = labels.shape
    V, E = word_embedding.shape

    # ---- glue: embedding gathers, head averaging, normalization, padding ----
    # TODO(synk): the nn.Embedding lookups (self.we) stay as XLA gathers; an
    # in-kernel gather would need manual per-row DMA (pl.ANY + make_async_copy)
    # and is not worth it at E=300.
    we = word_embedding.astype(jnp.float32)
    # Faithful to torch: n_heads == 0 (all-pad query) yields Inf/NaN, same as
    # the PyTorch module.
    n_heads = jnp.sum(heads != 0, axis=-1, keepdims=True).astype(jnp.float32)
    heads_e = jnp.sum(we[heads], axis=-2) / n_heads                  # [B,Q,E]
    labels_e = we[labels]                                            # [BL,P,E]

    nq, nl = B * Q, BL * P
    h_flat = heads_e.reshape(nq, E)
    l_flat = labels_e.reshape(nl, E)

    # Per-side inverse norms (f32), applied once in the wrapper so the kernel
    # body is a pure matmul.  max(norm^2, eps^2) matches torch except for
    # sub-eps-norm vectors (only the padded rows/cols, sliced away below).
    r1 = jax.lax.rsqrt(jnp.maximum(
        jnp.sum(h_flat * h_flat, axis=-1, keepdims=True), EPS * EPS))
    r2 = jax.lax.rsqrt(jnp.maximum(
        jnp.sum(l_flat * l_flat, axis=-1, keepdims=True), EPS * EPS))
    h_n = h_flat * r1                                                # [nq,E]
    l_n = l_flat * r2                                                # [nl,E]

    # ---- tiling -------------------------------------------------------------
    e_pad = max(_round_up(E, 128), 128)
    f32_only = (jnp.dtype(matmul_dtype) == jnp.dtype(jnp.float32)
                and jnp.dtype(out_dtype) == jnp.dtype(jnp.float32))
    sub = 8 if f32_only else 16    # sublane granule (bf16 packs 16 rows/vreg)

    tm = min(MAX_TM, _round_up(nq, sub))
    tn = min(MAX_TN, _round_up(nl, 128))
    # v7x megacore: if the grid would be (1,1), split one axis into two tiles
    # so both TensorCores get work (best effort; tiny problems stay (1,1)).
    if _round_up(nq, tm) == tm and _round_up(nl, tn) == tn:
        if tn >= 256:
            tn = _round_up(tn // 2, 128)
        elif tm >= 2 * sub:
            tm = _round_up(tm // 2, sub)
    nq_pad = _round_up(nq, tm)
    nl_pad = _round_up(nl, tn)

    h_p = jnp.zeros((nq_pad, e_pad), matmul_dtype).at[:nq, :E].set(
        h_n.astype(matmul_dtype))
    lt_p = jnp.zeros((e_pad, nl_pad), matmul_dtype).at[:E, :nl].set(
        l_n.T.astype(matmul_dtype))

    grid_m, grid_n = nq_pad // tm, nl_pad // tn
    in_bytes = jnp.dtype(matmul_dtype).itemsize
    out_bytes = jnp.dtype(out_dtype).itemsize
    cost = pl.CostEstimate(
        flops=2 * nq_pad * nl_pad * e_pad,
        transcendentals=0,
        bytes_accessed=(in_bytes * nq_pad * e_pad * grid_n      # h_p re-streamed per col tile
                        + in_bytes * e_pad * nl_pad * grid_m    # lt_p re-streamed per row tile
                        + out_bytes * nq_pad * nl_pad))

    out = pl.pallas_call(
        _concept_kernel,
        out_shape=jax.ShapeDtypeStruct((nq_pad, nl_pad), out_dtype),
        grid_spec=pltpu.PrefetchScalarGridSpec(
            num_scalar_prefetch=0,
            grid=(grid_m, grid_n),
            in_specs=[
                pl.BlockSpec((tm, e_pad), lambda i, j: (i, 0)),
                pl.BlockSpec((e_pad, tn), lambda i, j: (0, j)),
            ],
            out_specs=pl.BlockSpec((tm, tn), lambda i, j: (i, j)),
        ),
        compiler_params=pltpu.CompilerParams(
            dimension_semantics=("parallel", "parallel")),
        cost_estimate=cost,
    )(h_p, lt_p)

    return out[:nq, :nl].reshape(B, Q, BL, P)


def _reference_forward(heads, labels, word_embedding):
    n_heads = jnp.sum(heads != 0, axis=-1, keepdims=True).astype(jnp.float32)
    heads_e = jnp.sum(word_embedding[heads], axis=-2) / n_heads      # [B,Q,E]
    labels_e = word_embedding[labels]                                # [BL,P,E]
    a = heads_e[:, :, None, None, :]                                 # [B,Q,1,1,E]
    b = labels_e[None, None, :, :, :]                                # [1,1,BL,P,E]
    dot = jnp.sum(a * b, axis=-1)
    w1 = jnp.sum(a * a, axis=-1)
    w2 = jnp.sum(b * b, axis=-1)
    return dot * jax.lax.rsqrt(jnp.maximum(w1 * w2, EPS * EPS))


if __name__ == "__main__":
    key = jax.random.PRNGKey(0)
    B, Q, H, P, V = 2, 8, 4, 16, 50

    k1, k2, k3, k4 = jax.random.split(key, 4)

    # head token ids in [1,V); zero out some trailing slots to exercise the
    # (heads != 0) count, but keep at least one real head per query.
    heads = jax.random.randint(k1, (B, Q, H), 1, V, jnp.int32)
    drop = jax.random.uniform(k2, (B, Q, H)) < 0.4
    drop = drop.at[..., 0].set(False)
    heads = jnp.where(drop, 0, heads)

    labels = jax.random.randint(k3, (B, P), 1, V, jnp.int32)

    word_embedding = jax.random.normal(k4, (V, EMB_DIM), jnp.float32) * 0.1
    word_embedding = word_embedding.at[0].set(0.0)   # padding_idx=0 row

    ref = _reference_forward(heads, labels, word_embedding)

    # f32 MXU path: tight accuracy check of the kernel structure.
    fwd_f32 = jax.jit(functools.partial(
        concept_branch_forward, matmul_dtype=jnp.float32, out_dtype=jnp.float32))
    scores_f32 = jax.block_until_ready(fwd_f32(heads, labels, word_embedding))
    assert scores_f32.shape == (B, Q, B, P)
    assert jnp.allclose(scores_f32, ref, atol=1e-4, rtol=1e-4), "f32 mismatch"
    assert bool(jnp.all(jnp.abs(scores_f32) <= 1.0 + 1e-4))

    # Default (bf16 operands) fast path: looser tolerance.
    fwd_bf16 = jax.jit(concept_branch_forward)
    scores_bf16 = jax.block_until_ready(fwd_bf16(heads, labels, word_embedding))
    assert scores_bf16.shape == (B, Q, B, P)
    assert jnp.allclose(scores_bf16, ref, atol=3e-2, rtol=3e-2), "bf16 mismatch"
    assert bool(jnp.all(jnp.abs(scores_bf16) <= 1.0 + 2e-2))

    print("KERNEL_OK")
</pallas_src>

<mosaic_0001>
module attributes {stable_mosaic.version = 11 : i64} {
  func.func @_concept_kernel(%arg0: i32, %arg1: i32, %arg2: memref<8x384xf32, #tpu.memory_space<vmem>>, %arg3: memref<384x128xf32, #tpu.memory_space<vmem>>, %arg4: memref<8x128xf32, #tpu.memory_space<vmem>>) attributes {dimension_semantics = [#tpu.dimension_semantics<parallel>, #tpu.dimension_semantics<parallel>], iteration_bounds = array<i64: 2, 1>, scalar_prefetch = 0 : i64, scratch_operands = 0 : i64, tpu.core_type = #tpu.core_type<tc>, window_params = [{transform_indices = @transform_0, window_bounds = array<i64: 8, 384>}, {transform_indices = @transform_1, window_bounds = array<i64: 384, 128>}, {transform_indices = @transform_2, window_bounds = array<i64: 8, 128>}]} {
    %c0 = arith.constant 0 : index
    %c0_0 = arith.constant 0 : index
    %0 = vector.load %arg2[%c0, %c0_0] : memref<8x384xf32, #tpu.memory_space<vmem>>, vector<8x384xf32>
    %c0_1 = arith.constant 0 : index
    %c0_2 = arith.constant 0 : index
    %1 = vector.load %arg3[%c0_1, %c0_2] : memref<384x128xf32, #tpu.memory_space<vmem>>, vector<384x128xf32>
    %cst = arith.constant dense<0.000000e+00> : vector<8x128xf32>
    %2 = tpu.matmul %0, %1, %cst {dimension_numbers = #tpu.dot_dimension_numbers<[1], [0], [0], [1], [0, 0, 1, 1], [], []>} : vector<8x384xf32>, vector<384x128xf32>, vector<8x128xf32> -> vector<8x128xf32>
    %c0_3 = arith.constant 0 : index
    %c0_4 = arith.constant 0 : index
    %3 = vector.load %arg4[%c0_3, %c0_4] : memref<8x128xf32, #tpu.memory_space<vmem>>, vector<8x128xf32>
    tpu.vector_store %arg4[%c0_3, %c0_4], %2 {strides = array<i32>} : memref<8x128xf32, #tpu.memory_space<vmem>>, vector<8x128xf32>,
    return
  }
  func.func @transform_0(%arg0: i32, %arg1: i32) -> (i32, i32) {
    %c0_i32 = arith.constant 0 : i32
    %c0_i32_0 = arith.constant 0 : i32
    return %arg0, %c0_i32 : i32, i32
  }
  func.func @transform_1(%arg0: i32, %arg1: i32) -> (i32, i32) {
    %c0_i32 = arith.constant 0 : i32
    %c0_i32_0 = arith.constant 0 : i32
    return %c0_i32, %arg1 : i32, i32
  }
  func.func @transform_2(%arg0: i32, %arg1: i32) -> (i32, i32) {
    %c0_i32 = arith.constant 0 : i32
    return %arg0, %arg1 : i32, i32
  }
}

</mosaic_0001>

<llo_original>
// kernel: concept_branch_forward.1
$region0: #{concept_branch_forward.1}
  #allocation0 [shape = 'u32[]', space=smem, size = 0x4, offset = 0x4, fixed_abs, tag = 'smem constant byte address 0x4 - core index']
  #allocation1 [shape = 'u32[72,128]{1,0:T(1,128)}', space=vmem, size = 0x9000, scoped, tag = 'internal scratch']
  %s0 = inlined_call_operand.vmem [shape: f32[16,384], index: 0, kind: input, shape index: {}]
  %s1 = inlined_call_operand.vmem [shape: f32[384,128], index: 1, kind: input, shape index: {}]
  %s2 = inlined_call_operand.vmem [shape: f32[16,128], index: 2, kind: output, shape index: {}]
  %s3 = sld [smem:[#allocation0]]
  $region41: #{concept_branch_forward.1} parent=0
    _
  %s5 = ssub.s32 1, %s3
  %s6 = scalar_select 0, %s5, %s3
  loop: start=0, step=1, limit=4
  $region2: #{concept_branch_forward.1} parent=0 // loop_pre_header
    _
  $region3: #{concept_branch_forward.1} parent=0 // loop_header
    %s8 = sphi 0, %s12
    %p9 = scmp.ge.s32.totalorder %s8, 4
    %s15 = sphi 0, %s27
    %s16 = sphi 0, %s23
    %s17 = sphi 0, %s15
    %s18 = sphi 0, %s16
    %s19 = sphi 0, %s17
    %s20 = sphi 0, %s18
    %s30 = sphi 0, %s32
    %s33 = sphi 0, %s30
    %s34 = sphi 0, %s33
    %s50 = sphi 0, %s34
    %s56 = sphi 0, %s58
    %s59 = sphi 0, %s56
    %s60 = sphi 0, %s59
    %s76 = sphi 0, %s60
    %s84 = sphi 0, %s86
    %s87 = sphi 0, %s84
    %s88 = sphi 0, %s87
    %s104 = sphi 0, %s88
  $region4: #{concept_branch_forward.1} parent=0 // loop_header_branch
    %11 = sbr.rel (%p9) target = $region8
  $region5: #{concept_branch_forward.1} parent=0 // loop_body
    %s13 = ssub.s32 %s8, 1
    %s14 = ssub.s32 %s8, 2
    %s21 = sadd.s32 1, %s16
    %p22 = scmp.ge.s32.totalorder %s21, 1
    %s23 = scalar_select %p22, 0, %s21
    %s24 = sadd.s32 1, %s15
    %s25 = scalar_select %p22, %s24, %s15
    %p26 = scmp.ge.s32.totalorder %s25, 2
    %s27 = scalar_select %p26, 0, %s25
    %s28 = ssub.s32 %s15, %s27
    %p29 = scmp.eq.s32.totalorder %s28, 0
    %s31 = sadd.s32 %s30, 1
    %s32 = scalar_select %p29, %s30, %s31
    %p35 = pneg %p29
    %p36 = scmp.eq.s32.totalorder %s8, 1
    %p37 = por %p35, %p36
    %p38 = scmp.ne.s32.totalorder %s30, %s33
    %p39 = scmp.eq.s32.totalorder %s8, 0
    %p40 = por %p38, %p39
    %p41 = scmp.ne.s32.totalorder %s30, %s33
    %p42 = scmp.eq.s32.totalorder %s13, 1
    %p43 = por %p41, %p42
    %p44 = scmp.ne.s32.totalorder %s33, %s34
    %p45 = scmp.eq.s32.totalorder %s13, 0
    %p46 = por %p44, %p45
    %p47 = scmp.ne.s32.totalorder %s33, %s34
    %p48 = scmp.eq.s32.totalorder %s14, 1
    %p49 = por %p47, %p48
    %p51 = scmp.ne.s32.totalorder %s34, %s50
    %p52 = scmp.eq.s32.totalorder %s14, 0
    %p53 = por %p51, %p52
    %s54 = ssub.s32 %s16, %s23
    %p55 = scmp.eq.s32.totalorder %s54, 0
    %s57 = sadd.s32 %s56, 1
    %s58 = scalar_select %p55, %s56, %s57
    %p61 = pneg %p55
    %p62 = scmp.eq.s32.totalorder %s8, 1
    %p63 = por %p61, %p62
    %p64 = scmp.ne.s32.totalorder %s56, %s59
    %p65 = scmp.eq.s32.totalorder %s8, 0
    %p66 = por %p64, %p65
    %p67 = scmp.ne.s32.totalorder %s56, %s59
    %p68 = scmp.eq.s32.totalorder %s13, 1
    %p69 = por %p67, %p68
    %p70 = scmp.ne.s32.totalorder %s59, %s60
    %p71 = scmp.eq.s32.totalorder %s13, 0
    %p72 = por %p70, %p71
    %p73 = scmp.ne.s32.totalorder %s59, %s60
    %p74 = scmp.eq.s32.totalorder %s14, 1
    %p75 = por %p73, %p74
    %p77 = scmp.ne.s32.totalorder %s60, %s76
    %p78 = scmp.eq.s32.totalorder %s14, 0
    %p79 = por %p77, %p78
    %s80 = ssub.s32 %s15, %s27
    %s81 = ssub.s32 %s16, %s23
    %s82 = sor.u32 %s80, %s81
    %p83 = scmp.eq.s32.totalorder %s82, 0
    %s85 = sadd.s32 %s84, 1
    %s86 = scalar_select %p83, %s84, %s85
    %p89 = pneg %p83
    %p90 = scmp.eq.s32.totalorder %s8, 1
    %p91 = por %p89, %p90
    %p92 = scmp.ne.s32.totalorder %s84, %s87
    %p93 = scmp.eq.s32.totalorder %s8, 0
    %p94 = por %p92, %p93
    %p95 = scmp.ne.s32.totalorder %s84, %s87
    %p96 = scmp.eq.s32.totalorder %s13, 1
    %p97 = por %p95, %p96
    %p98 = scmp.ne.s32.totalorder %s87, %s88
    %p99 = scmp.eq.s32.totalorder %s13, 0
    %p100 = por %p98, %p99
    %p101 = scmp.ne.s32.totalorder %s87, %s88
    %p102 = scmp.eq.s32.totalorder %s14, 1
    %p103 = por %p101, %p102
    %p105 = scmp.ne.s32.totalorder %s88, %s104
    %p106 = scmp.eq.s32.totalorder %s14, 0
    %p107 = por %p105, %p106
    %p108 = scmp.le.s32.totalorder 1, %s8
    %p109 = scmp.lt.s32.totalorder %s8, 3
    %p110 = pnand %p108, %p109
    %p111 = pneg %p110
    // Predicated region
    $region9: #{concept_branch_forward.1} parent=5 // pred_check
      _
    $region10: #{concept_branch_forward.1} parent=5 // pred_check_branch
      %113 = sbr.rel (%p110) target = $region12
    $region11: #{concept_branch_forward.1} parent=5 // pred_region
      %s114 = ssub.s32 %s8, 1
      // Predicated region
      $region13: #{concept_branch_forward.1} parent=11 // pred_check
        %p115 = pneg %p72
      $region14: #{concept_branch_forward.1} parent=11 // pred_check_branch
        %117 = sbr.rel (%p115) target = $region16
      $region15: #{concept_branch_forward.1} parent=11 // pred_region
        %p118 = scmp.lt.s32.totalorder %s18, 0
        %s119 = scalar_select %p118, %s18, 0
        %s120 = smul.addr %s119, 8
        %s121 = scalar_lea.vmem %s1, %s120
      $region16: #{concept_branch_forward.1} parent=11 // pred_fallthru
        _
    $region12: #{concept_branch_forward.1} parent=5 // pred_fallthru
      _
    %p122 = scmp.lt.s32.totalorder %s8, 2
    // Predicated region
    $region17: #{concept_branch_forward.1} parent=5 // pred_check
      %p123 = pneg %p122
    $region18: #{concept_branch_forward.1} parent=5 // pred_check_branch
      %125 = sbr.rel (%p123) target = $region20
    $region19: #{concept_branch_forward.1} parent=5 // pred_region
      // Predicated region
      $region21: #{concept_branch_forward.1} parent=19 // pred_check
        %p126 = pneg %p40
      $region22: #{concept_branch_forward.1} parent=19 // pred_check_branch
        %128 = sbr.rel (%p126) target = $region24
      $region23: #{concept_branch_forward.1} parent=19 // pred_region
        %p129 = scmp.lt.s32.totalorder %s15, 1
        %s130 = scalar_select %p129, %s15, 1
        %s131 = smul.addr %s130, 3
        %s132 = smul.addr %s131, 8
        %s133 = scalar_lea.vmem %s0, %s132
      $region24: #{concept_branch_forward.1} parent=19 // pred_fallthru
        _
    $region20: #{concept_branch_forward.1} parent=5 // pred_fallthru
      _
    %p134 = scmp.le.s32.totalorder 1, %s8
    %p135 = scmp.lt.s32.totalorder %s8, 3
    %p136 = pnand %p134, %p135
    %p137 = pneg %p136
    // Predicated region
    $region25: #{concept_branch_forward.1} parent=5 // pred_check
      _
    $region26: #{concept_branch_forward.1} parent=5 // pred_check_branch
      %139 = sbr.rel (%p136) target = $region28
    $region27: #{concept_branch_forward.1} parent=5 // pred_region
      %s140 = ssub.s32 %s8, 1
      %p141 = scmp.lt.s32.totalorder %s17, 1
      %s142 = scalar_select %p141, %s17, 1
      %s143 = smul.addr %s142, 3
      %s144 = smul.addr %s143, 8
      %s145 = scalar_lea.vmem %s0, %s144
      %p146 = pneg %p46
      %p147 = pneg %p43
      %p148 = scmp.lt.s32.totalorder %s18, 0
      %s149 = scalar_select %p148, %s18, 0
      %s150 = smul.addr %s149, 8
      %s151 = scalar_lea.vmem %s1, %s150
      %p152 = pneg %p72
      %p153 = pneg %p69
      %p154 = pneg %p100
      %p155 = pneg %p97
      %p156 = scmp.lt.s32.totalorder %s17, 1
      %s157 = scalar_select %p156, %s17, 1
      %p158 = scmp.lt.s32.totalorder %s18, 0
      %s159 = scalar_select %p158, %s18, 0
      %s160 = sadd.s32 %s159, %s157
      %s161 = smul.addr %s160, 8
      %s162 = scalar_lea.vmem %s2, %s161
      %p163 = scmp.lt.s32.totalorder %s17, 1
      %s164 = scalar_select %p163, %s17, 1
      %s165 = smul.addr %s164, 3
      %s166 = smul.addr %s165, 8
      %s167 = scalar_lea.vmem %s0, %s166
      %p168 = scmp.lt.s32.totalorder %s18, 0
      %s169 = scalar_select %p168, %s18, 0
      %s170 = smul.addr %s169, 8
      %s171 = scalar_lea.vmem %s1, %s170
      %p172 = scmp.lt.s32.totalorder %s17, 1
      %s173 = scalar_select %p172, %s17, 1
      %p174 = scmp.lt.s32.totalorder %s18, 0
      %s175 = scalar_select %p174, %s18, 0
      %s176 = sadd.s32 %s175, %s173
      %s177 = smul.addr %s176, 8
      %s178 = scalar_lea.vmem %s2, %s177
      %v179 = vld [vmem:[%s167] sm:$0xff]
      %v180 = vld [vmem:[%s167 + $0x8] sm:$0xff]
      %v181 = vld [vmem:[%s167 + $0x10] sm:$0xff]
      %v182 = vld [vmem:[%s171] sm:$0xff]
      %v183 = vld [vmem:[%s171 + $0x8] sm:$0xff]
      %v184 = vld [vmem:[%s171 + $0x10] sm:$0xff]
      %v185 = vld [vmem:[%s171 + $0x18] sm:$0xff]
      %v186 = vld [vmem:[%s171 + $0x20] sm:$0xff]
      %v187 = vld [vmem:[%s171 + $0x28] sm:$0xff]
      %v188 = vld [vmem:[%s171 + $0x30] sm:$0xff]
      %v189 = vld [vmem:[%s171 + $0x38] sm:$0xff]
      %v190 = vld [vmem:[%s171 + $0x40] sm:$0xff]
      %v191 = vld [vmem:[%s171 + $0x48] sm:$0xff]
      %v192 = vld [vmem:[%s171 + $0x50] sm:$0xff]
      %v193 = vld [vmem:[%s171 + $0x58] sm:$0xff]
      %v194 = vld [vmem:[%s171 + $0x60] sm:$0xff]
      %v195 = vld [vmem:[%s171 + $0x68] sm:$0xff]
      %v196 = vld [vmem:[%s171 + $0x70] sm:$0xff]
      %v197 = vld [vmem:[%s171 + $0x78] sm:$0xff]
      %v198 = vld [vmem:[%s171 + $0x80] sm:$0xff]
      %v199 = vld [vmem:[%s171 + $0x88] sm:$0xff]
      %v200 = vld [vmem:[%s171 + $0x90] sm:$0xff]
      %v201 = vld [vmem:[%s171 + $0x98] sm:$0xff]
      %v202 = vld [vmem:[%s171 + $0xa0] sm:$0xff]
      %v203 = vld [vmem:[%s171 + $0xa8] sm:$0xff]
      %v204 = vld [vmem:[%s171 + $0xb0] sm:$0xff]
      %v205 = vld [vmem:[%s171 + $0xb8] sm:$0xff]
      %v206 = vld [vmem:[%s171 + $0xc0] sm:$0xff]
      %v207 = vld [vmem:[%s171 + $0xc8] sm:$0xff]
      %v208 = vld [vmem:[%s171 + $0xd0] sm:$0xff]
      %v209 = vld [vmem:[%s171 + $0xd8] sm:$0xff]
      %v210 = vld [vmem:[%s171 + $0xe0] sm:$0xff]
      %v211 = vld [vmem:[%s171 + $0xe8] sm:$0xff]
      %v212 = vld [vmem:[%s171 + $0xf0] sm:$0xff]
      %v213 = vld [vmem:[%s171 + $0xf8] sm:$0xff]
      %v214 = vld [vmem:[%s171 + $0x100] sm:$0xff]
      %v215 = vld [vmem:[%s171 + $0x108] sm:$0xff]
      %v216 = vld [vmem:[%s171 + $0x110] sm:$0xff]
      %v217 = vld [vmem:[%s171 + $0x118] sm:$0xff]
      %v218 = vld [vmem:[%s171 + $0x120] sm:$0xff]
      %v219 = vld [vmem:[%s171 + $0x128] sm:$0xff]
      %v220 = vld [vmem:[%s171 + $0x130] sm:$0xff]
      %v221 = vld [vmem:[%s171 + $0x138] sm:$0xff]
      %v222 = vld [vmem:[%s171 + $0x140] sm:$0xff]
      %v223 = vld [vmem:[%s171 + $0x148] sm:$0xff]
      %v224 = vld [vmem:[%s171 + $0x150] sm:$0xff]
      %v225 = vld [vmem:[%s171 + $0x158] sm:$0xff]
      %v226 = vld [vmem:[%s171 + $0x160] sm:$0xff]
      %v227 = vld [vmem:[%s171 + $0x168] sm:$0xff]
      %v228 = vld [vmem:[%s171 + $0x170] sm:$0xff]
      %v229 = vld [vmem:[%s171 + $0x178] sm:$0xff]
      %230 = vmatpush.msra.mxu0 %v197
      %231 = vmatpush.msra.mxu0 %v196
      %232 = vmatpush.msra.mxu0 %v195
      %233 = vmatpush.msra.mxu0 %v194
      %234 = vmatpush.msra.mxu0 %v193
      %235 = vmatpush.msra.mxu0 %v192
      %236 = vmatpush.msra.mxu0 %v191
      %237 = vmatpush.msra.mxu0 %v190
      %238 = vmatpush.msra.mxu0 %v189
      %239 = vmatpush.msra.mxu0 %v188
      %240 = vmatpush.msra.mxu0 %v187
      %241 = vmatpush.msra.mxu0 %v186
      %242 = vmatpush.msra.mxu0 %v185
      %243 = vmatpush.msra.mxu0 %v184
      %244 = vmatpush.msra.mxu0 %v183
      %245 = vmatpush.msra.mxu0 %v182
      %246 = vmatmul.f32.gmra.mxu0 %v179
      %v247 = vpop.f32.mrf.mxu0
      %v248 = vadd.f32 0.0, %v247
      %249 = vdwg.mxu0
      %250 = vmatpush.msra.mxu0 %v213
      %251 = vmatpush.msra.mxu0 %v212
      %252 = vmatpush.msra.mxu0 %v211
      %253 = vmatpush.msra.mxu0 %v210
      %254 = vmatpush.msra.mxu0 %v209
      %255 = vmatpush.msra.mxu0 %v208
      %256 = vmatpush.msra.mxu0 %v207
      %257 = vmatpush.msra.mxu0 %v206
      %258 = vmatpush.msra.mxu0 %v205
      %259 = vmatpush.msra.mxu0 %v204
      %260 = vmatpush.msra.mxu0 %v203
      %261 = vmatpush.msra.mxu0 %v202
      %262 = vmatpush.msra.mxu0 %v201
      %263 = vmatpush.msra.mxu0 %v200
      %264 = vmatpush.msra.mxu0 %v199
      %265 = vmatpush.msra.mxu0 %v198
      %266 = vmatmul.f32.gmra.mxu0 %v180
      %v267 = vpop.f32.mrf.mxu0
      %v268 = vadd.f32 %v248, %v267
      %269 = vdwg.mxu0
      %270 = vmatpush.msra.mxu0 %v229
      %271 = vmatpush.msra.mxu0 %v228
      %272 = vmatpush.msra.mxu0 %v227
      %273 = vmatpush.msra.mxu0 %v226
      %274 = vmatpush.msra.mxu0 %v225
      %275 = vmatpush.msra.mxu0 %v224
      %276 = vmatpush.msra.mxu0 %v223
      %277 = vmatpush.msra.mxu0 %v222
      %278 = vmatpush.msra.mxu0 %v221
      %279 = vmatpush.msra.mxu0 %v220
      %280 = vmatpush.msra.mxu0 %v219
      %281 = vmatpush.msra.mxu0 %v218
      %282 = vmatpush.msra.mxu0 %v217
      %283 = vmatpush.msra.mxu0 %v216
      %284 = vmatpush.msra.mxu0 %v215
      %285 = vmatpush.msra.mxu0 %v214
      %286 = vmatmul.f32.gmra.mxu0 %v181
      %v287 = vpop.f32.mrf.mxu0
      %v288 = vadd.f32 %v268, %v287
      %289 = vdwg.mxu0
      %290 = vst [vmem:[%s178] sm:$0xff] %v288
      %p291 = scmp.lt.s32.totalorder %s17, 1
      %s292 = scalar_select %p291, %s17, 1
      %p293 = scmp.lt.s32.totalorder %s18, 0
      %s294 = scalar_select %p293, %s18, 0
      %s295 = sadd.s32 %s294, %s292
      %s296 = smul.addr %s295, 8
      %s297 = scalar_lea.vmem %s2, %s296
      // Predicated region
      $region29: #{concept_branch_forward.1} parent=27 // pred_check
        %p298 = pneg %p97
      $region30: #{concept_branch_forward.1} parent=27 // pred_check_branch
        %300 = sbr.rel (%p298) target = $region32
      $region31: #{concept_branch_forward.1} parent=27 // pred_region
        _
      $region32: #{concept_branch_forward.1} parent=27 // pred_fallthru
        _
    $region28: #{concept_branch_forward.1} parent=5 // pred_fallthru
      _
    %p301 = scmp.le.s32.totalorder 2, %s8
    // Predicated region
    $region33: #{concept_branch_forward.1} parent=5 // pred_check
      %p302 = pneg %p301
    $region34: #{concept_branch_forward.1} parent=5 // pred_check_branch
      %304 = sbr.rel (%p302) target = $region36
    $region35: #{concept_branch_forward.1} parent=5 // pred_region
      %s305 = ssub.s32 %s8, 2
      // Predicated region
      $region37: #{concept_branch_forward.1} parent=35 // pred_check
        %p306 = pneg %p103
      $region38: #{concept_branch_forward.1} parent=35 // pred_check_branch
        %308 = sbr.rel (%p306) target = $region40
      $region39: #{concept_branch_forward.1} parent=35 // pred_region
        %p309 = scmp.lt.s32.totalorder %s19, 1
        %s310 = scalar_select %p309, %s19, 1
        %p311 = scmp.lt.s32.totalorder %s20, 0
        %s312 = scalar_select %p311, %s20, 0
        %s313 = sadd.s32 %s312, %s310
        %s314 = smul.addr %s313, 8
        %s315 = scalar_lea.vmem %s2, %s314
      $region40: #{concept_branch_forward.1} parent=35 // pred_fallthru
        _
    $region36: #{concept_branch_forward.1} parent=5 // pred_fallthru
      _
  $region6: #{concept_branch_forward.1} parent=0 // loop_footer
    %s12 = sadd.s32 1, %s8
  $region7: #{concept_branch_forward.1} parent=0 // loop_footer_branch
    %7 = sbr.rel target = $region3
  $region8: #{concept_branch_forward.1} parent=0 // loop_exit
    _

</llo_original>
